<compile_context>
chip_gen: v7x
topology: tpu7x:2x2x1
jax: 0.10.0
libtpu: 0.0.40
codegen_flags: <defaults>
</compile_context>

<pallas_src>
import functools

import jax
import jax.numpy as jnp
from jax import lax
from jax.experimental import pallas as pl
from jax.experimental.pallas import tpu as pltpu

HIDDEN_SIZES = [32, 32]                 # SofaNet(hidden_sizes=[32, 32])
LAYER_SIZES = [1] + HIDDEN_SIZES + [1]
N_LAYERS = len(LAYER_SIZES) - 1         # 3 linear layers per branch


def _sofanet_kernel(n_layers, n_chunks, chunk, alpha_ref, *refs):
    """refs = (W, b) per fused layer, then (u1_ref, u2_ref).

    Layout: batch on the lane (last) axis.  alpha_ref is (1, tile_b); the live
    activation per sub-chunk is (features, chunk); u1_ref/u2_ref are
    (1, tile_b).  Weights are (out_features, in_features) so the kernel
    computes u = W @ u_prev + b.
    """
    params = refs[: 2 * n_layers]
    u1_ref = refs[2 * n_layers]
    u2_ref = refs[2 * n_layers + 1]

    # Tiny resident weights (constant index map -> DMA'd once, then reused).
    ws = [params[2 * l][...] for l in range(n_layers)]
    bs = [params[2 * l + 1][...] for l in range(n_layers)]

    def body(c, carry):
        off = pl.multiple_of(c * chunk, chunk)
        x = alpha_ref[:, pl.ds(off, chunk)]              # (1, chunk), lane-dense

        # Layer 0: 1 -> 2*H0 is a K=1 matmul (outer product) -> VPU broadcast
        # FMA instead of an MXU pass.
        u = ws[0] * x + bs[0]                            # (2*H0, chunk)
        if n_layers > 1:
            u = jnp.maximum(u, 0.0)

        # Middle (block-diagonal fused) and final layers: one MXU matmul each.
        for l in range(1, n_layers):
            u = jnp.dot(ws[l], u, preferred_element_type=jnp.float32) + bs[l]
            if l < n_layers - 1:
                u = jnp.maximum(u, 0.0)

        # u is (2, chunk): row 0 = branch u1, row 1 = branch u2.
        u1_ref[:, pl.ds(off, chunk)] = u[0:1, :]
        u2_ref[:, pl.ds(off, chunk)] = u[1:2, :]
        return carry

    lax.fori_loop(0, n_chunks, body, 0, unroll=True)


def _block_diag2(a, b):
    """Exact block-diagonal concat of two 2-D matrices (zero off-blocks)."""
    m1, n1 = a.shape
    m2, n2 = b.shape
    top = jnp.concatenate([a, jnp.zeros((m1, n2), a.dtype)], axis=1)
    bot = jnp.concatenate([jnp.zeros((m2, n1), b.dtype), b], axis=1)
    return jnp.concatenate([top, bot], axis=0)


def fuse_params(params_u1, params_u2):
    """Fuse the two branches into one set of layers (run ONCE at setup).

    params_u*: list of (W, b) with W in torch orientation (out_features,
    in_features) and b (out_features,).

    Layer 0 (shared scalar input): concat along the output axis -> (2*H0, 1).
    Other layers: exact block-diagonal -> branches stay independent.
    Biases become (out, 1) for (features, lanes) broadcasting in the kernel.
    """
    fused = []
    n_layers = len(params_u1)
    for l in range(n_layers):
        w1, b1 = params_u1[l]
        w2, b2 = params_u2[l]
        if l == 0:
            w = jnp.concatenate([w1, w2], axis=0)              # (2*H0, 1)
        else:
            w = _block_diag2(w1, w2)                           # (2*Ho, 2*Hi)
        b = jnp.concatenate([b1, b2], axis=0).reshape(-1, 1)   # (2*Ho, 1)
        fused.append((jnp.asarray(w, jnp.float32), jnp.asarray(b, jnp.float32)))
    return fused


def sofanet_forward(alpha, fused, *, tile_b=2048, chunk=256, core_parallel=False):
    """alpha: (N,) f32.  fused: output of fuse_params (precomputed once).

    tile_b: lanes per grid step (multiple of `chunk`); chunk: inner sub-chunk
    lane width (multiple of 128, 256 keeps the (64, chunk) activation at ~16
    vregs).  core_parallel=True uses pltpu.CORE_PARALLEL (v7x, 2 TCs).
    """
    assert chunk % 128 == 0, "chunk must be a multiple of 128 lanes"
    assert tile_b % chunk == 0, "tile_b must be a multiple of chunk"
    n = alpha.shape[0]
    n_layers = len(fused)

    x = alpha.astype(jnp.float32).reshape(1, n)      # free layout change

    flat_inputs = [x]
    in_specs = [pl.BlockSpec((1, tile_b), lambda i: (0, i))]
    weight_elems = 0
    for (w, b) in fused:
        flat_inputs += [w, b]
        # Full (tiny) arrays resident every step, constant index map.
        in_specs += [
            pl.BlockSpec(w.shape, lambda i: (0, 0)),
            pl.BlockSpec(b.shape, lambda i: (0, 0)),
        ]
        weight_elems += w.size + b.size

    out_shape = (jax.ShapeDtypeStruct((1, n), jnp.float32),
                 jax.ShapeDtypeStruct((1, n), jnp.float32))
    out_specs = [pl.BlockSpec((1, tile_b), lambda i: (0, i)),
                 pl.BlockSpec((1, tile_b), lambda i: (0, i))]

    sem = pltpu.CORE_PARALLEL if core_parallel else "parallel"

    flops = sum(2 * w.shape[0] * w.shape[1] * n for (w, _) in fused)
    bytes_accessed = 4 * (3 * n + weight_elems)      # 4B in + 2*4B out per elem

    kernel = functools.partial(_sofanet_kernel, n_layers, tile_b // chunk, chunk)
    u1, u2 = pl.pallas_call(
        kernel,
        out_shape=out_shape,
        grid_spec=pltpu.PrefetchScalarGridSpec(
            num_scalar_prefetch=0,
            grid=(pl.cdiv(n, tile_b),),              # partial final block is masked
            in_specs=in_specs,
            out_specs=out_specs,
        ),
        compiler_params=pltpu.CompilerParams(dimension_semantics=(sem,)),
        cost_estimate=pl.CostEstimate(
            flops=flops, transcendentals=0, bytes_accessed=bytes_accessed),
    )(*flat_inputs)

    return u1[0], u2[0]                              # squeeze(1) -> (N,), free reshape


def init_params(key):
    """Deterministic init mimicking torch.nn.Linear (uniform +/- 1/sqrt(fan_in)).

    Weights kept in torch orientation (out_features, in_features).
    """
    params_u1, params_u2 = [], []
    for i in range(N_LAYERS):
        fan_in, fan_out = LAYER_SIZES[i], LAYER_SIZES[i + 1]
        bound = 1.0 / jnp.sqrt(jnp.float32(fan_in))
        for params in (params_u1, params_u2):
            key, kw, kb = jax.random.split(key, 3)
            w = jax.random.uniform(kw, (fan_out, fan_in), jnp.float32, -bound, bound)
            b = jax.random.uniform(kb, (fan_out,), jnp.float32, -bound, bound)
            params.append((w, b))
    return params_u1, params_u2


def reference_forward(alpha, params_u1, params_u2):
    """Pure-JAX reference with torch semantics: y = x @ W.T + b."""
    u1 = alpha.reshape(-1, 1).astype(jnp.float32)
    u2 = alpha.reshape(-1, 1).astype(jnp.float32)
    for l in range(N_LAYERS):
        w1, b1 = params_u1[l]
        w2, b2 = params_u2[l]
        u1 = u1 @ w1.T + b1
        u2 = u2 @ w2.T + b2
        if l < N_LAYERS - 1:
            u1 = jnp.maximum(u1, 0.0)
            u2 = jnp.maximum(u2, 0.0)
    return u1[:, 0], u2[:, 0]


if __name__ == "__main__":
    key = jax.random.PRNGKey(0)
    kp, ka = jax.random.split(key)
    params_u1, params_u2 = init_params(kp)

    # Fuse the two branches ONCE (hoisted out of the per-call path).
    fused = fuse_params(params_u1, params_u2)

    fwd = jax.jit(sofanet_forward,
                  static_argnames=("tile_b", "chunk", "core_parallel"))

    # Case 1: small batch, single grid step, partial block + inner chunk loop.
    N = 100
    alpha = jax.random.uniform(ka, (N,), jnp.float32, -1.0, 1.0)
    u1, u2 = fwd(alpha, fused, tile_b=512, chunk=256)
    jax.block_until_ready((u1, u2))
    r1, r2 = reference_forward(alpha, params_u1, params_u2)
    assert u1.shape == (N,) and u2.shape == (N,)
    assert jnp.allclose(u1, r1, atol=1e-5, rtol=1e-5)
    assert jnp.allclose(u2, r2, atol=1e-5, rtol=1e-5)

    # Case 2: multi-step grid with a ragged tail (grid = 3, last block partial).
    N2 = 2500
    alpha2 = jax.random.uniform(jax.random.PRNGKey(1), (N2,), jnp.float32, -1.0, 1.0)
    v1, v2 = fwd(alpha2, fused, tile_b=1024, chunk=256)
    jax.block_until_ready((v1, v2))
    s1, s2 = reference_forward(alpha2, params_u1, params_u2)
    assert v1.shape == (N2,) and v2.shape == (N2,)
    assert jnp.allclose(v1, s1, atol=1e-5, rtol=1e-5)
    assert jnp.allclose(v2, s2, atol=1e-5, rtol=1e-5)

    print("KERNEL_OK")
</pallas_src>

<mosaic_0001>
module attributes {stable_mosaic.version = 11 : i64} {
  func.func @_sofanet_kernel(%arg0: i32, %arg1: memref<1x512xf32, #tpu.memory_space<vmem>>, %arg2: memref<64x1xf32, #tpu.memory_space<vmem>>, %arg3: memref<64x1xf32, #tpu.memory_space<vmem>>, %arg4: memref<64x64xf32, #tpu.memory_space<vmem>>, %arg5: memref<64x1xf32, #tpu.memory_space<vmem>>, %arg6: memref<2x64xf32, #tpu.memory_space<vmem>>, %arg7: memref<2x1xf32, #tpu.memory_space<vmem>>, %arg8: memref<1x512xf32, #tpu.memory_space<vmem>>, %arg9: memref<1x512xf32, #tpu.memory_space<vmem>>) attributes {dimension_semantics = [#tpu.dimension_semantics<parallel>], iteration_bounds = array<i64: 1>, scalar_prefetch = 0 : i64, scratch_operands = 0 : i64, tpu.core_type = #tpu.core_type<tc>, window_params = [{transform_indices = @transform_0, window_bounds = array<i64: 1, 512>}, {pipeline_mode = #tpu.pipeline_mode<synchronous>, transform_indices = @transform_1, window_bounds = array<i64: 64, 1>}, {pipeline_mode = #tpu.pipeline_mode<synchronous>, transform_indices = @transform_2, window_bounds = array<i64: 64, 1>}, {pipeline_mode = #tpu.pipeline_mode<synchronous>, transform_indices = @transform_3, window_bounds = array<i64: 64, 64>}, {pipeline_mode = #tpu.pipeline_mode<synchronous>, transform_indices = @transform_4, window_bounds = array<i64: 64, 1>}, {pipeline_mode = #tpu.pipeline_mode<synchronous>, transform_indices = @transform_5, window_bounds = array<i64: 2, 64>}, {pipeline_mode = #tpu.pipeline_mode<synchronous>, transform_indices = @transform_6, window_bounds = array<i64: 2, 1>}, {transform_indices = @transform_7, window_bounds = array<i64: 1, 512>}, {transform_indices = @transform_8, window_bounds = array<i64: 1, 512>}]} {
    %c0 = arith.constant 0 : index
    %c0_0 = arith.constant 0 : index
    %0 = vector.load %arg2[%c0, %c0_0] : memref<64x1xf32, #tpu.memory_space<vmem>>, vector<64x1xf32>
    %c0_1 = arith.constant 0 : index
    %c0_2 = arith.constant 0 : index
    %1 = vector.load %arg4[%c0_1, %c0_2] : memref<64x64xf32, #tpu.memory_space<vmem>>, vector<64x64xf32>
    %c0_3 = arith.constant 0 : index
    %c0_4 = arith.constant 0 : index
    %2 = vector.load %arg6[%c0_3, %c0_4] : memref<2x64xf32, #tpu.memory_space<vmem>>, vector<2x64xf32>
    %c0_5 = arith.constant 0 : index
    %c0_6 = arith.constant 0 : index
    %3 = vector.load %arg3[%c0_5, %c0_6] : memref<64x1xf32, #tpu.memory_space<vmem>>, vector<64x1xf32>
    %c0_7 = arith.constant 0 : index
    %c0_8 = arith.constant 0 : index
    %4 = vector.load %arg5[%c0_7, %c0_8] : memref<64x1xf32, #tpu.memory_space<vmem>>, vector<64x1xf32>
    %c0_9 = arith.constant 0 : index
    %c0_10 = arith.constant 0 : index
    %5 = vector.load %arg7[%c0_9, %c0_10] : memref<2x1xf32, #tpu.memory_space<vmem>>, vector<2x1xf32>
    %c0_i32 = arith.constant 0 : i32
    %c256_i32 = arith.constant 256 : i32
    %6 = arith.muli %c0_i32, %c256_i32 : i32
    %7 = tpu.assume_multiple %6, 256 : i32
    %c0_11 = arith.constant 0 : index
    %8 = arith.index_cast %7 : i32 to index
    %9 = vector.load %arg1[%c0_11, %8] : memref<1x512xf32, #tpu.memory_space<vmem>>, vector<1x256xf32>
    %10 = vector.broadcast %0 : vector<64x1xf32> to vector<64x256xf32>
    %11 = vector.broadcast %9 : vector<1x256xf32> to vector<64x256xf32>
    %12 = arith.mulf %10, %11 : vector<64x256xf32>
    %13 = vector.broadcast %3 : vector<64x1xf32> to vector<64x256xf32>
    %14 = arith.addf %12, %13 : vector<64x256xf32>
    %cst = arith.constant 0.000000e+00 : f32
    %15 = vector.broadcast %cst : f32 to vector<64x256xf32>
    %16 = arith.maximumf %14, %15 : vector<64x256xf32>
    %cst_12 = arith.constant dense<0.000000e+00> : vector<64x256xf32>
    %17 = tpu.matmul %1, %16, %cst_12 {dimension_numbers = #tpu.dot_dimension_numbers<[1], [0], [0], [1], [0, 0, 1, 1], [], []>} : vector<64x64xf32>, vector<64x256xf32>, vector<64x256xf32> -> vector<64x256xf32>
    %18 = vector.broadcast %4 : vector<64x1xf32> to vector<64x256xf32>
    %19 = arith.addf %17, %18 : vector<64x256xf32>
    %cst_13 = arith.constant 0.000000e+00 : f32
    %20 = vector.broadcast %cst_13 : f32 to vector<64x256xf32>
    %21 = arith.maximumf %19, %20 : vector<64x256xf32>
    %cst_14 = arith.constant dense<0.000000e+00> : vector<2x256xf32>
    %22 = tpu.matmul %2, %21, %cst_14 {dimension_numbers = #tpu.dot_dimension_numbers<[1], [0], [0], [1], [0, 0, 1, 1], [], []>} : vector<2x64xf32>, vector<64x256xf32>, vector<2x256xf32> -> vector<2x256xf32>
    %23 = vector.broadcast %5 : vector<2x1xf32> to vector<2x256xf32>
    %24 = arith.addf %22, %23 : vector<2x256xf32>
    %25 = vector.extract_strided_slice %24 {offsets = [0, 0], sizes = [1, 256], strides = [1, 1]} : vector<2x256xf32> to vector<1x256xf32>
    %c0_15 = arith.constant 0 : index
    %26 = arith.index_cast %7 : i32 to index
    %27 = vector.load %arg8[%c0_15, %26] : memref<1x512xf32, #tpu.memory_space<vmem>>, vector<1x256xf32>
    tpu.vector_store %arg8[%c0_15, %26], %25 {strides = array<i32>} : memref<1x512xf32, #tpu.memory_space<vmem>>, vector<1x256xf32>,
    %28 = vector.extract_strided_slice %24 {offsets = [1, 0], sizes = [1, 256], strides = [1, 1]} : vector<2x256xf32> to vector<1x256xf32>
    %c0_16 = arith.constant 0 : index
    %29 = arith.index_cast %7 : i32 to index
    %30 = vector.load %arg9[%c0_16, %29] : memref<1x512xf32, #tpu.memory_space<vmem>>, vector<1x256xf32>
    tpu.vector_store %arg9[%c0_16, %29], %28 {strides = array<i32>} : memref<1x512xf32, #tpu.memory_space<vmem>>, vector<1x256xf32>,
    %c1_i32 = arith.constant 1 : i32
    %c256_i32_17 = arith.constant 256 : i32
    %31 = arith.muli %c1_i32, %c256_i32_17 : i32
    %32 = tpu.assume_multiple %31, 256 : i32
    %c0_18 = arith.constant 0 : index
    %33 = arith.index_cast %32 : i32 to index
    %34 = vector.load %arg1[%c0_18, %33] : memref<1x512xf32, #tpu.memory_space<vmem>>, vector<1x256xf32>
    %35 = vector.broadcast %0 : vector<64x1xf32> to vector<64x256xf32>
    %36 = vector.broadcast %34 : vector<1x256xf32> to vector<64x256xf32>
    %37 = arith.mulf %35, %36 : vector<64x256xf32>
    %38 = vector.broadcast %3 : vector<64x1xf32> to vector<64x256xf32>
    %39 = arith.addf %37, %38 : vector<64x256xf32>
    %cst_19 = arith.constant 0.000000e+00 : f32
    %40 = vector.broadcast %cst_19 : f32 to vector<64x256xf32>
    %41 = arith.maximumf %39, %40 : vector<64x256xf32>
    %cst_20 = arith.constant dense<0.000000e+00> : vector<64x256xf32>
    %42 = tpu.matmul %1, %41, %cst_20 {dimension_numbers = #tpu.dot_dimension_numbers<[1], [0], [0], [1], [0, 0, 1, 1], [], []>} : vector<64x64xf32>, vector<64x256xf32>, vector<64x256xf32> -> vector<64x256xf32>
    %43 = vector.broadcast %4 : vector<64x1xf32> to vector<64x256xf32>
    %44 = arith.addf %42, %43 : vector<64x256xf32>
    %cst_21 = arith.constant 0.000000e+00 : f32
    %45 = vector.broadcast %cst_21 : f32 to vector<64x256xf32>
    %46 = arith.maximumf %44, %45 : vector<64x256xf32>
    %cst_22 = arith.constant dense<0.000000e+00> : vector<2x256xf32>
    %47 = tpu.matmul %2, %46, %cst_22 {dimension_numbers = #tpu.dot_dimension_numbers<[1], [0], [0], [1], [0, 0, 1, 1], [], []>} : vector<2x64xf32>, vector<64x256xf32>, vector<2x256xf32> -> vector<2x256xf32>
    %48 = vector.broadcast %5 : vector<2x1xf32> to vector<2x256xf32>
    %49 = arith.addf %47, %48 : vector<2x256xf32>
    %50 = vector.extract_strided_slice %49 {offsets = [0, 0], sizes = [1, 256], strides = [1, 1]} : vector<2x256xf32> to vector<1x256xf32>
    %c0_23 = arith.constant 0 : index
    %51 = arith.index_cast %32 : i32 to index
    %52 = vector.load %arg8[%c0_23, %51] : memref<1x512xf32, #tpu.memory_space<vmem>>, vector<1x256xf32>
    tpu.vector_store %arg8[%c0_23, %51], %50 {strides = array<i32>} : memref<1x512xf32, #tpu.memory_space<vmem>>, vector<1x256xf32>,
    %53 = vector.extract_strided_slice %49 {offsets = [1, 0], sizes = [1, 256], strides = [1, 1]} : vector<2x256xf32> to vector<1x256xf32>
    %c0_24 = arith.constant 0 : index
    %54 = arith.index_cast %32 : i32 to index
    %55 = vector.load %arg9[%c0_24, %54] : memref<1x512xf32, #tpu.memory_space<vmem>>, vector<1x256xf32>
    tpu.vector_store %arg9[%c0_24, %54], %53 {strides = array<i32>} : memref<1x512xf32, #tpu.memory_space<vmem>>, vector<1x256xf32>,
    %c2_i32 = arith.constant 2 : i32
    return
  }
  func.func @transform_0(%arg0: i32) -> (i32, i32) {
    %c0_i32 = arith.constant 0 : i32
    %c0_i32_0 = arith.constant 0 : i32
    return %c0_i32, %arg0 : i32, i32
  }
  func.func @transform_1(%arg0: i32) -> (i32, i32) {
    %c0_i32 = arith.constant 0 : i32
    %c0_i32_0 = arith.constant 0 : i32
    %c0_i32_1 = arith.constant 0 : i32
    return %c0_i32, %c0_i32_0 : i32, i32
  }
  func.func @transform_2(%arg0: i32) -> (i32, i32) {
    %c0_i32 = arith.constant 0 : i32
    %c0_i32_0 = arith.constant 0 : i32
    %c0_i32_1 = arith.constant 0 : i32
    return %c0_i32, %c0_i32_0 : i32, i32
  }
  func.func @transform_3(%arg0: i32) -> (i32, i32) {
    %c0_i32 = arith.constant 0 : i32
    %c0_i32_0 = arith.constant 0 : i32
    %c0_i32_1 = arith.constant 0 : i32
    return %c0_i32, %c0_i32_0 : i32, i32
  }
  func.func @transform_4(%arg0: i32) -> (i32, i32) {
    %c0_i32 = arith.constant 0 : i32
    %c0_i32_0 = arith.constant 0 : i32
    %c0_i32_1 = arith.constant 0 : i32
    return %c0_i32, %c0_i32_0 : i32, i32
  }
  func.func @transform_5(%arg0: i32) -> (i32, i32) {
    %c0_i32 = arith.constant 0 : i32
    %c0_i32_0 = arith.constant 0 : i32
    %c0_i32_1 = arith.constant 0 : i32
    return %c0_i32, %c0_i32_0 : i32, i32
  }
  func.func @transform_6(%arg0: i32) -> (i32, i32) {
    %c0_i32 = arith.constant 0 : i32
    %c0_i32_0 = arith.constant 0 : i32
    %c0_i32_1 = arith.constant 0 : i32
    return %c0_i32, %c0_i32_0 : i32, i32
  }
  func.func @transform_7(%arg0: i32) -> (i32, i32) {
    %c0_i32 = arith.constant 0 : i32
    %c0_i32_0 = arith.constant 0 : i32
    return %c0_i32, %arg0 : i32, i32
  }
  func.func @transform_8(%arg0: i32) -> (i32, i32) {
    %c0_i32 = arith.constant 0 : i32
    %c0_i32_0 = arith.constant 0 : i32
    return %c0_i32, %arg0 : i32, i32
  }
}

</mosaic_0001>

<llo_original>
// kernel: sofanet_forward.1
$region0: #{sofanet_forward.1}
  #allocation0 [shape = 'u32[]', space=smem, size = 0x4, offset = 0x4, fixed_abs, tag = 'smem constant byte address 0x4 - core index']
  #allocation1 [shape = 'u32[144,128]{1,0:T(1,128)}', space=vmem, size = 0x12000, scoped, tag = 'internal scratch']
  %s0 = inlined_call_operand.vmem [shape: f32[1,100], index: 0, kind: input, shape index: {}]
  %s1 = inlined_call_operand.vmem [shape: f32[64,1], index: 1, kind: input, shape index: {}]
  %s2 = inlined_call_operand.vmem [shape: f32[64,1], index: 2, kind: input, shape index: {}]
  %s3 = inlined_call_operand.vmem [shape: f32[64,64], index: 3, kind: input, shape index: {}]
  %s4 = inlined_call_operand.vmem [shape: f32[64,1], index: 4, kind: input, shape index: {}]
  %s5 = inlined_call_operand.vmem [shape: f32[2,64], index: 5, kind: input, shape index: {}]
  %s6 = inlined_call_operand.vmem [shape: f32[2,1], index: 6, kind: input, shape index: {}]
  %s7 = inlined_call_operand.hbm [shape: f32[1,100], index: 7, kind: output, shape index: {0}]
  %s8 = inlined_call_operand.hbm [shape: f32[1,100], index: 8, kind: output, shape index: {1}]
  %9 = xla_tuple %s7, %s8
  %s10 = sld [smem:[#allocation0]]
  $region46: #{sofanet_forward.1} parent=0
    _
  %s12 = ssub.s32 1, %s10
  %s13 = scalar_select 0, %s12, %s10
  $region1: #{sofanet_forward.1} parent=0
    #allocation2 [shape = 'u8[2048]{0}', space=vmem, size = 0x800, scoped, tag = 'output window, operand 0, single buffered']
    #allocation3 [shape = 's32[1]{0}', space=sflag, size = 0x4, scoped, tag = 'scoped memory for sofanet_forward.1']
    #allocation4 [shape = 'u8[2048]{0}', space=vmem, size = 0x800, scoped, tag = 'output window, operand 1, single buffered']
    #allocation5 [shape = 's32[1]{0}', space=sflag, size = 0x4, scoped, tag = 'scoped memory for sofanet_forward.1']
    %14 = vsyncpa [#allocation3], 0
    %15 = vsyncpa [#allocation5], 0
    // Predicated region
    $region2: #{sofanet_forward.1} parent=1 // pred_check
      _
    $region3: #{sofanet_forward.1} parent=1 // pred_check_branch
      %17 = sbr.rel (0) target = $region5
    $region4: #{sofanet_forward.1} parent=1 // pred_region
      _
    $region5: #{sofanet_forward.1} parent=1 // pred_fallthru
      _
    // Predicated region
    $region6: #{sofanet_forward.1} parent=1 // pred_check
      _
    $region7: #{sofanet_forward.1} parent=1 // pred_check_branch
      %19 = sbr.rel (0) target = $region9
    $region8: #{sofanet_forward.1} parent=1 // pred_region
      _
    $region9: #{sofanet_forward.1} parent=1 // pred_fallthru
      _
    // Predicated region
    $region10: #{sofanet_forward.1} parent=1 // pred_check
      _
    $region11: #{sofanet_forward.1} parent=1 // pred_check_branch
      %21 = sbr.rel (0) target = $region13
    $region12: #{sofanet_forward.1} parent=1 // pred_region
      _
    $region13: #{sofanet_forward.1} parent=1 // pred_fallthru
      _
    // Predicated region
    $region14: #{sofanet_forward.1} parent=1 // pred_check
      _
    $region15: #{sofanet_forward.1} parent=1 // pred_check_branch
      %23 = sbr.rel (0) target = $region17
    $region16: #{sofanet_forward.1} parent=1 // pred_region
      _
    $region17: #{sofanet_forward.1} parent=1 // pred_fallthru
      _
    // Predicated region
    $region18: #{sofanet_forward.1} parent=1 // pred_check
      _
    $region19: #{sofanet_forward.1} parent=1 // pred_check_branch
      %25 = sbr.rel (0) target = $region21
    $region20: #{sofanet_forward.1} parent=1 // pred_region
      _
    $region21: #{sofanet_forward.1} parent=1 // pred_fallthru
      _
    // Predicated region
    $region22: #{sofanet_forward.1} parent=1 // pred_check
      _
    $region23: #{sofanet_forward.1} parent=1 // pred_check_branch
      %27 = sbr.rel (0) target = $region25
    $region24: #{sofanet_forward.1} parent=1 // pred_region
      _
    $region25: #{sofanet_forward.1} parent=1 // pred_fallthru
      _
    // Predicated region
    $region26: #{sofanet_forward.1} parent=1 // pred_check
      _
    $region27: #{sofanet_forward.1} parent=1 // pred_check_branch
      %29 = sbr.rel (0) target = $region29
    $region28: #{sofanet_forward.1} parent=1 // pred_region
      _
    $region29: #{sofanet_forward.1} parent=1 // pred_fallthru
      _
    %v30 = vld [vmem:[%s1] sm:$0xff]
    %v31 = vld [vmem:[%s1 + $0x8] sm:$0xff]
    %v32 = vld [vmem:[%s1 + $0x10] sm:$0xff]
    %v33 = vld [vmem:[%s1 + $0x18] sm:$0xff]
    %v34 = vld [vmem:[%s1 + $0x20] sm:$0xff]
    %v35 = vld [vmem:[%s1 + $0x28] sm:$0xff]
    %v36 = vld [vmem:[%s1 + $0x30] sm:$0xff]
    %v37 = vld [vmem:[%s1 + $0x38] sm:$0xff]
    %v38 = vld [vmem:[%s3] sm:$0xff]
    %v39 = vld [vmem:[%s3 + $0x8] sm:$0xff]
    %v40 = vld [vmem:[%s3 + $0x10] sm:$0xff]
    %v41 = vld [vmem:[%s3 + $0x18] sm:$0xff]
    %v42 = vld [vmem:[%s3 + $0x20] sm:$0xff]
    %v43 = vld [vmem:[%s3 + $0x28] sm:$0xff]
    %v44 = vld [vmem:[%s3 + $0x30] sm:$0xff]
    %v45 = vld [vmem:[%s3 + $0x38] sm:$0xff]
    %v46 = vld [vmem:[%s5] sm:$0x3]
    %v47 = vld [vmem:[%s2] sm:$0xff]
    %v48 = vld [vmem:[%s2 + $0x8] sm:$0xff]
    %v49 = vld [vmem:[%s2 + $0x10] sm:$0xff]
    %v50 = vld [vmem:[%s2 + $0x18] sm:$0xff]
    %v51 = vld [vmem:[%s2 + $0x20] sm:$0xff]
    %v52 = vld [vmem:[%s2 + $0x28] sm:$0xff]
    %v53 = vld [vmem:[%s2 + $0x30] sm:$0xff]
    %v54 = vld [vmem:[%s2 + $0x38] sm:$0xff]
    %v55 = vld [vmem:[%s4] sm:$0xff]
    %v56 = vld [vmem:[%s4 + $0x8] sm:$0xff]
    %v57 = vld [vmem:[%s4 + $0x10] sm:$0xff]
    %v58 = vld [vmem:[%s4 + $0x18] sm:$0xff]
    %v59 = vld [vmem:[%s4 + $0x20] sm:$0xff]
    %v60 = vld [vmem:[%s4 + $0x28] sm:$0xff]
    %v61 = vld [vmem:[%s4 + $0x30] sm:$0xff]
    %v62 = vld [vmem:[%s4 + $0x38] sm:$0xff]
    %v63 = vld [vmem:[%s6] sm:$0x3]
    %v64 = vld [vmem:[%s0] sm:$0x3]
    %66 = vset.pattern.permute.xlu0 0
    %67 = vperm.xlu0 %66, %v30
    %v68 = vpop.permute.xlu0 %67
    %71 = vset.pattern.permute.xlu0 0
    %72 = vperm.xlu0 %71, %v31
    %v73 = vpop.permute.xlu0 %72
    %76 = vset.pattern.permute.xlu0 0
    %77 = vperm.xlu0 %76, %v32
    %v78 = vpop.permute.xlu0 %77
    %81 = vset.pattern.permute.xlu0 0
    %82 = vperm.xlu0 %81, %v33
    %v83 = vpop.permute.xlu0 %82
    %86 = vset.pattern.permute.xlu0 0
    %87 = vperm.xlu0 %86, %v34
    %v88 = vpop.permute.xlu0 %87
    %91 = vset.pattern.permute.xlu0 0
    %92 = vperm.xlu0 %91, %v35
    %v93 = vpop.permute.xlu0 %92
    %96 = vset.pattern.permute.xlu0 0
    %97 = vperm.xlu0 %96, %v36
    %v98 = vpop.permute.xlu0 %97
    %101 = vset.pattern.permute.xlu0 0
    %102 = vperm.xlu0 %101, %v37
    %v103 = vpop.permute.xlu0 %102
    %v106 = vlaneseq
    %v107 = vshrl.u32 %v106, 7
    %v108 = vsub.s32 0, %v107
    %v109 = vrot.slane %v64, %v108
    %v110 = vlaneseq
    %v111 = vshrl.u32 %v110, 7
    %v112 = vsub.s32 1, %v111
    %v113 = vrot.slane %v64, %v112
    %v116 = vmul.f32 %v68, %v109
    %v117 = vmul.f32 %v68, %v113
    %v118 = vmul.f32 %v73, %v109
    %v119 = vmul.f32 %v73, %v113
    %v120 = vmul.f32 %v78, %v109
    %v121 = vmul.f32 %v78, %v113
    %v122 = vmul.f32 %v83, %v109
    %v123 = vmul.f32 %v83, %v113
    %v124 = vmul.f32 %v88, %v109
    %v125 = vmul.f32 %v88, %v113
    %v126 = vmul.f32 %v93, %v109
    %v127 = vmul.f32 %v93, %v113
    %v128 = vmul.f32 %v98, %v109
    %v129 = vmul.f32 %v98, %v113
    %v130 = vmul.f32 %v103, %v109
    %v131 = vmul.f32 %v103, %v113
    %133 = vset.pattern.permute.xlu0 0
    %134 = vperm.xlu0 %133, %v47
    %v135 = vpop.permute.xlu0 %134
    %138 = vset.pattern.permute.xlu0 0
    %139 = vperm.xlu0 %138, %v48
    %v140 = vpop.permute.xlu0 %139
    %143 = vset.pattern.permute.xlu0 0
    %144 = vperm.xlu0 %143, %v49
    %v145 = vpop.permute.xlu0 %144
    %148 = vset.pattern.permute.xlu0 0
    %149 = vperm.xlu0 %148, %v50
    %v150 = vpop.permute.xlu0 %149
    %153 = vset.pattern.permute.xlu0 0
    %154 = vperm.xlu0 %153, %v51
    %v155 = vpop.permute.xlu0 %154
    %158 = vset.pattern.permute.xlu0 0
    %159 = vperm.xlu0 %158, %v52
    %v160 = vpop.permute.xlu0 %159
    %163 = vset.pattern.permute.xlu0 0
    %164 = vperm.xlu0 %163, %v53
    %v165 = vpop.permute.xlu0 %164
    %168 = vset.pattern.permute.xlu0 0
    %169 = vperm.xlu0 %168, %v54
    %v170 = vpop.permute.xlu0 %169
    %v172 = vadd.f32 %v116, %v135
    %v173 = vadd.f32 %v117, %v135
    %v174 = vadd.f32 %v118, %v140
    %v175 = vadd.f32 %v119, %v140
    %v176 = vadd.f32 %v120, %v145
    %v177 = vadd.f32 %v121, %v145
    %v178 = vadd.f32 %v122, %v150
    %v179 = vadd.f32 %v123, %v150
    %v180 = vadd.f32 %v124, %v155
    %v181 = vadd.f32 %v125, %v155
    %v182 = vadd.f32 %v126, %v160
    %v183 = vadd.f32 %v127, %v160
    %v184 = vadd.f32 %v128, %v165
    %v185 = vadd.f32 %v129, %v165
    %v186 = vadd.f32 %v130, %v170
    %v187 = vadd.f32 %v131, %v170
    %v188 = vmax.f32 %v172, 0.0
    %v189 = vmax.f32 %v173, 0.0
    %v190 = vmax.f32 %v174, 0.0
    %v191 = vmax.f32 %v175, 0.0
    %v192 = vmax.f32 %v176, 0.0
    %v193 = vmax.f32 %v177, 0.0
    %v194 = vmax.f32 %v178, 0.0
    %v195 = vmax.f32 %v179, 0.0
    %v196 = vmax.f32 %v180, 0.0
    %v197 = vmax.f32 %v181, 0.0
    %v198 = vmax.f32 %v182, 0.0
    %v199 = vmax.f32 %v183, 0.0
    %v200 = vmax.f32 %v184, 0.0
    %v201 = vmax.f32 %v185, 0.0
    %v202 = vmax.f32 %v186, 0.0
    %v203 = vmax.f32 %v187, 0.0
    %205 = vset.pattern.permute.xlu0 0
    %206 = vperm.xlu0 %205, %v55
    %v207 = vpop.permute.xlu0 %206
    %210 = vset.pattern.permute.xlu0 0
    %211 = vperm.xlu0 %210, %v56
    %v212 = vpop.permute.xlu0 %211
    %215 = vset.pattern.permute.xlu0 0
    %216 = vperm.xlu0 %215, %v57
    %v217 = vpop.permute.xlu0 %216
    %220 = vset.pattern.permute.xlu0 0
    %221 = vperm.xlu0 %220, %v58
    %v222 = vpop.permute.xlu0 %221
    %225 = vset.pattern.permute.xlu0 0
    %226 = vperm.xlu0 %225, %v59
    %v227 = vpop.permute.xlu0 %226
    %230 = vset.pattern.permute.xlu0 0
    %231 = vperm.xlu0 %230, %v60
    %v232 = vpop.permute.xlu0 %231
    %235 = vset.pattern.permute.xlu0 0
    %236 = vperm.xlu0 %235, %v61
    %v237 = vpop.permute.xlu0 %236
    %240 = vset.pattern.permute.xlu0 0
    %241 = vperm.xlu0 %240, %v62
    %v242 = vpop.permute.xlu0 %241
    %vm244 = vcmask 523264
    %v246 = vsel %vm244, %v38, 0
    %v249 = vsel %vm244, %v39, 0
    %v252 = vsel %vm244, %v40, 0
    %v255 = vsel %vm244, %v41, 0
    %v258 = vsel %vm244, %v42, 0
    %v261 = vsel %vm244, %v43, 0
    %v264 = vsel %vm244, %v44, 0
    %v267 = vsel %vm244, %v45, 0
    %269 = vmatprep.subr.mxu0 %v189
    %270 = vmatpush1.msra.mxu0 %v188
    %271 = vmatprep.subr.mxu0 %v191
    %272 = vmatpush1.msra.mxu0 %v190
    %273 = vmatprep.subr.mxu0 %v193
    %274 = vmatpush1.msra.mxu0 %v192
    %275 = vmatprep.subr.mxu0 %v195
    %276 = vmatpush1.msra.mxu0 %v194
    %277 = vmatprep.subr.mxu0 %v197
    %278 = vmatpush1.msra.mxu0 %v196
    %279 = vmatprep.subr.mxu0 %v199
    %280 = vmatpush1.msra.mxu0 %v198
    %281 = vmatprep.subr.mxu0 %v201
    %282 = vmatpush1.msra.mxu0 %v200
    %283 = vmatprep.subr.mxu0 %v203
    %284 = vmatpush1.msra.mxu0 %v202
    %285 = vmatprep.subr.mxu0 0.0
    %286 = vmatpush1.msra.mxu0 0.0
    %287 = vmatprep.subr.mxu0 0.0
    %288 = vmatpush1.msra.mxu0 0.0
    %289 = vmatprep.subr.mxu0 0.0
    %290 = vmatpush1.msra.mxu0 0.0
    %291 = vmatprep.subr.mxu0 0.0
    %292 = vmatpush1.msra.mxu0 0.0
    %293 = vmatprep.subr.mxu0 0.0
    %294 = vmatpush1.msra.mxu0 0.0
    %295 = vmatprep.subr.mxu0 0.0
    %296 = vmatpush1.msra.mxu0 0.0
    %297 = vmatprep.subr.mxu0 0.0
    %298 = vmatpush1.msra.mxu0 0.0
    %299 = vmatprep.subr.mxu0 0.0
    %300 = vmatpush1.msra.mxu0 0.0
    %301 = vmatprep.subr.mxu0 0.0
    %302 = vmatpush1.msra.mxu0 0.0
    %303 = vmatprep.subr.mxu0 0.0
    %304 = vmatpush1.msra.mxu0 0.0
    %305 = vmatprep.subr.mxu0 0.0
    %306 = vmatpush1.msra.mxu0 0.0
    %307 = vmatprep.subr.mxu0 0.0
    %308 = vmatpush1.msra.mxu0 0.0
    %309 = vmatprep.subr.mxu0 0.0
    %310 = vmatpush1.msra.mxu0 0.0
    %311 = vmatprep.subr.mxu0 0.0
    %312 = vmatpush1.msra.mxu0 0.0
    %313 = vmatprep.subr.mxu0 0.0
    %314 = vmatpush1.msra.mxu0 0.0
    %315 = vmatprep.subr.mxu0 0.0
    %316 = vmatpush1.msra.mxu0 0.0
    %317 = vmatprep.subr.mxu0 0.0
    %318 = vmatpush1.msra.mxu0 0.0
    %319 = vmatprep.subr.mxu0 0.0
    %320 = vmatpush1.msra.mxu0 0.0
    %321 = vmatprep.subr.mxu0 0.0
    %322 = vmatpush1.msra.mxu0 0.0
    %323 = vmatprep.subr.mxu0 0.0
    %324 = vmatpush1.msra.mxu0 0.0
    %325 = vmatprep.subr.mxu0 0.0
    %326 = vmatpush1.msra.mxu0 0.0
    %327 = vmatprep.subr.mxu0 0.0
    %328 = vmatpush1.msra.mxu0 0.0
    %329 = vmatprep.subr.mxu0 0.0
    %330 = vmatpush1.msra.mxu0 0.0
    %331 = vmatprep.subr.mxu0 0.0
    %332 = vmatpush1.msra.mxu0 0.0
    %333 = vmatprep.mubr.f32.mxu0 0.0
    %334 = vmatmul.mubr.f32.gmra.mrb[0].mxu0 %v246
    %v335 = vpop.f32.mrb[0].mxu0
    %v336 = vadd.f32 %v207, %v335
    %v337 = vpop.f32.mrb[0].mxu0
    %v338 = vadd.f32 %v207, %v337
    %339 = vmatprep.mubr.f32.mxu0 0.0
    %340 = vmatmul.mubr.f32.gmra.mrb[0].mxu0 %v249
    %v341 = vpop.f32.mrb[0].mxu0
    %v342 = vadd.f32 %v212, %v341
    %v343 = vpop.f32.mrb[0].mxu0
    %v344 = vadd.f32 %v212, %v343
    %345 = vmatprep.mubr.f32.mxu0 0.0
    %346 = vmatmul.mubr.f32.gmra.mrb[0].mxu0 %v252
    %v347 = vpop.f32.mrb[0].mxu0
    %v348 = vadd.f32 %v217, %v347
    %v349 = vpop.f32.mrb[0].mxu0
    %v350 = vadd.f32 %v217, %v349
    %351 = vmatprep.mubr.f32.mxu0 0.0
    %352 = vmatmul.mubr.f32.gmra.mrb[0].mxu0 %v255
    %v353 = vpop.f32.mrb[0].mxu0
    %v354 = vadd.f32 %v222, %v353
    %v355 = vpop.f32.mrb[0].mxu0
    %v356 = vadd.f32 %v222, %v355
    %357 = vmatprep.mubr.f32.mxu0 0.0
    %358 = vmatmul.mubr.f32.gmra.mrb[0].mxu0 %v258
    %v359 = vpop.f32.mrb[0].mxu0
    %v360 = vadd.f32 %v227, %v359
    %v361 = vpop.f32.mrb[0].mxu0
    %v362 = vadd.f32 %v227, %v361
    %363 = vmatprep.mubr.f32.mxu0 0.0
    %364 = vmatmul.mubr.f32.gmra.mrb[0].mxu0 %v261
    %v365 = vpop.f32.mrb[0].mxu0
    %v366 = vadd.f32 %v232, %v365
    %v367 = vpop.f32.mrb[0].mxu0
    %v368 = vadd.f32 %v232, %v367
    %369 = vmatprep.mubr.f32.mxu0 0.0
    %370 = vmatmul.mubr.f32.gmra.mrb[0].mxu0 %v264
    %v371 = vpop.f32.mrb[0].mxu0
    %v372 = vadd.f32 %v237, %v371
    %v373 = vpop.f32.mrb[0].mxu0
    %v374 = vadd.f32 %v237, %v373
    %375 = vmatprep.mubr.f32.mxu0 0.0
    %376 = vmatmul.mubr.f32.gmra.mrb[0].mxu0 %v267
    %v377 = vpop.f32.mrb[0].mxu0
    %v378 = vadd.f32 %v242, %v377
    %v379 = vpop.f32.mrb[0].mxu0
    %v380 = vadd.f32 %v242, %v379
    %381 = vdwg.mxu0
    %v382 = vmax.f32 %v336, 0.0
    %v383 = vmax.f32 %v338, 0.0
    %v384 = vmax.f32 %v342, 0.0
    %v385 = vmax.f32 %v344, 0.0
    %v386 = vmax.f32 %v348, 0.0
    %v387 = vmax.f32 %v350, 0.0
    %v388 = vmax.f32 %v354, 0.0
    %v389 = vmax.f32 %v356, 0.0
    %v390 = vmax.f32 %v360, 0.0
    %v391 = vmax.f32 %v362, 0.0
    %v392 = vmax.f32 %v366, 0.0
    %v393 = vmax.f32 %v368, 0.0
    %v394 = vmax.f32 %v372, 0.0
    %v395 = vmax.f32 %v374, 0.0
    %v396 = vmax.f32 %v378, 0.0
    %v397 = vmax.f32 %v380, 0.0
    %399 = vset.pattern.permute.xlu0 0
    %400 = vperm.xlu0 %399, %v63
    %v401 = vpop.permute.xlu0 %400
    %v404 = vsel %vm244, %v46, 0
    %406 = vmatprep.subr.mxu0 %v383
    %407 = vmatpush1.msra.mxu0 %v382
    %408 = vmatprep.subr.mxu0 %v385
    %409 = vmatpush1.msra.mxu0 %v384
    %410 = vmatprep.subr.mxu0 %v387
    %411 = vmatpush1.msra.mxu0 %v386
    %412 = vmatprep.subr.mxu0 %v389
    %413 = vmatpush1.msra.mxu0 %v388
    %414 = vmatprep.subr.mxu0 %v391
    %415 = vmatpush1.msra.mxu0 %v390
    %416 = vmatprep.subr.mxu0 %v393
    %417 = vmatpush1.msra.mxu0 %v392
    %418 = vmatprep.subr.mxu0 %v395
    %419 = vmatpush1.msra.mxu0 %v394
    %420 = vmatprep.subr.mxu0 %v397
    %421 = vmatpush1.msra.mxu0 %v396
    %422 = vmatprep.subr.mxu0 0.0
    %423 = vmatpush1.msra.mxu0 0.0
    %424 = vmatprep.subr.mxu0 0.0
    %425 = vmatpush1.msra.mxu0 0.0
    %426 = vmatprep.subr.mxu0 0.0
    %427 = vmatpush1.msra.mxu0 0.0
    %428 = vmatprep.subr.mxu0 0.0
    %429 = vmatpush1.msra.mxu0 0.0
    %430 = vmatprep.subr.mxu0 0.0
    %431 = vmatpush1.msra.mxu0 0.0
    %432 = vmatprep.subr.mxu0 0.0
    %433 = vmatpush1.msra.mxu0 0.0
    %434 = vmatprep.subr.mxu0 0.0
    %435 = vmatpush1.msra.mxu0 0.0
    %436 = vmatprep.subr.mxu0 0.0
    %437 = vmatpush1.msra.mxu0 0.0
    %438 = vmatprep.subr.mxu0 0.0
    %439 = vmatpush1.msra.mxu0 0.0
    %440 = vmatprep.subr.mxu0 0.0
    %441 = vmatpush1.msra.mxu0 0.0
    %442 = vmatprep.subr.mxu0 0.0
    %443 = vmatpush1.msra.mxu0 0.0
    %444 = vmatprep.subr.mxu0 0.0
    %445 = vmatpush1.msra.mxu0 0.0
    %446 = vmatprep.subr.mxu0 0.0
    %447 = vmatpush1.msra.mxu0 0.0
    %448 = vmatprep.subr.mxu0 0.0
    %449 = vmatpush1.msra.mxu0 0.0
    %450 = vmatprep.subr.mxu0 0.0
    %451 = vmatpush1.msra.mxu0 0.0
    %452 = vmatprep.subr.mxu0 0.0
    %453 = vmatpush1.msra.mxu0 0.0
    %454 = vmatprep.subr.mxu0 0.0
    %455 = vmatpush1.msra.mxu0 0.0
    %456 = vmatprep.subr.mxu0 0.0
    %457 = vmatpush1.msra.mxu0 0.0
    %458 = vmatprep.subr.mxu0 0.0
    %459 = vmatpush1.msra.mxu0 0.0
    %460 = vmatprep.subr.mxu0 0.0
    %461 = vmatpush1.msra.mxu0 0.0
    %462 = vmatprep.subr.mxu0 0.0
    %463 = vmatpush1.msra.mxu0 0.0
    %464 = vmatprep.subr.mxu0 0.0
    %465 = vmatpush1.msra.mxu0 0.0
    %466 = vmatprep.subr.mxu0 0.0
    %467 = vmatpush1.msra.mxu0 0.0
    %468 = vmatprep.subr.mxu0 0.0
    %469 = vmatpush1.msra.mxu0 0.0
    %470 = vmatprep.mubr.f32.mxu0 0.0
    %471 = vmatmul.mubr.f32.gmra.mrb[0].mxu0 %v404
    %v472 = vpop.f32.mrb[0].mxu0
    %v473 = vadd.f32 %v401, %v472
    %v474 = vpop.f32.mrb[0].mxu0
    %v475 = vadd.f32 %v401, %v474
    %476 = vdwg.mxu0
    %v479 = vcombine.low %v473, %v475
    %v481 = vunpack.c.l.s4 1966171168
    %v482 = vunpack.c.0.s8 %v481
    %v483 = vlaneseq
    %v484 = vshrl.u32 %v483, 7
    %v485 = vsub.s32 %v482, %v484
    %v486 = vrot.slane %v479, %v485
    %v488 = vunpack.c.l.s4 1966171168
    %v489 = vunpack.c.0.s8 %v488
    %v490 = vlaneseq
    %v491 = vshrl.u32 %v490, 7
    %v492 = vsub.s32 %v489, %v491
    %v493 = vrot.slane %v486, %v492
    %v495 = vlaneseq
    %vm496 = vcmp.ge.s32.totalorder %v495, 0
    %vm497 = vcmp.lt.s32.totalorder %v495, 256
    %vm498 = vmand %vm496, %vm497
    %499 = vst.msk [vmem:[#allocation2] sm:$0x3] %vm498, %v493
    %v500 = vcombine.high %v486, %v486
    %v502 = vunpack.c.l.s4 1966171168
    %v503 = vunpack.c.0.s8 %v502
    %v504 = vlaneseq
    %v505 = vshrl.u32 %v504, 7
    %v506 = vsub.s32 %v503, %v505
    %v507 = vrot.slane %v500, %v506
    %509 = vst.msk [vmem:[#allocation4] sm:$0x3] %vm498, %v507
    %s510 = scalar_lea.vmem %s0, 2
    %v511 = vld [vmem:[%s510] sm:$0x3]
    %v513 = vlaneseq
    %v514 = vshrl.u32 %v513, 7
    %v515 = vsub.s32 0, %v514
    %v516 = vrot.slane %v511, %v515
    %v517 = vlaneseq
    %v518 = vshrl.u32 %v517, 7
    %v519 = vsub.s32 1, %v518
    %v520 = vrot.slane %v511, %v519
    %v523 = vmul.f32 %v68, %v516
    %v524 = vmul.f32 %v68, %v520
    %v525 = vmul.f32 %v73, %v516
    %v526 = vmul.f32 %v73, %v520
    %v527 = vmul.f32 %v78, %v516
    %v528 = vmul.f32 %v78, %v520
    %v529 = vmul.f32 %v83, %v516
    %v530 = vmul.f32 %v83, %v520
    %v531 = vmul.f32 %v88, %v516
    %v532 = vmul.f32 %v88, %v520
    %v533 = vmul.f32 %v93, %v516
    %v534 = vmul.f32 %v93, %v520
    %v535 = vmul.f32 %v98, %v516
    %v536 = vmul.f32 %v98, %v520
    %v537 = vmul.f32 %v103, %v516
    %v538 = vmul.f32 %v103, %v520
    %v539 = vadd.f32 %v523, %v135
    %v540 = vadd.f32 %v524, %v135
    %v541 = vadd.f32 %v525, %v140
    %v542 = vadd.f32 %v526, %v140
    %v543 = vadd.f32 %v527, %v145
    %v544 = vadd.f32 %v528, %v145
    %v545 = vadd.f32 %v529, %v150
    %v546 = vadd.f32 %v530, %v150
    %v547 = vadd.f32 %v531, %v155
    %v548 = vadd.f32 %v532, %v155
    %v549 = vadd.f32 %v533, %v160
    %v550 = vadd.f32 %v534, %v160
    %v551 = vadd.f32 %v535, %v165
    %v552 = vadd.f32 %v536, %v165
    %v553 = vadd.f32 %v537, %v170
    %v554 = vadd.f32 %v538, %v170
    %v555 = vmax.f32 %v539, 0.0
    %v556 = vmax.f32 %v540, 0.0
    %v557 = vmax.f32 %v541, 0.0
    %v558 = vmax.f32 %v542, 0.0
    %v559 = vmax.f32 %v543, 0.0
    %v560 = vmax.f32 %v544, 0.0
    %v561 = vmax.f32 %v545, 0.0
    %v562 = vmax.f32 %v546, 0.0
    %v563 = vmax.f32 %v547, 0.0
    %v564 = vmax.f32 %v548, 0.0
    %v565 = vmax.f32 %v549, 0.0
    %v566 = vmax.f32 %v550, 0.0
    %v567 = vmax.f32 %v551, 0.0
    %v568 = vmax.f32 %v552, 0.0
    %v569 = vmax.f32 %v553, 0.0
    %v570 = vmax.f32 %v554, 0.0
    %571 = vmatprep.subr.mxu0 %v556
    %572 = vmatpush1.msra.mxu0 %v555
    %573 = vmatprep.subr.mxu0 %v558
    %574 = vmatpush1.msra.mxu0 %v557
    %575 = vmatprep.subr.mxu0 %v560
    %576 = vmatpush1.msra.mxu0 %v559
    %577 = vmatprep.subr.mxu0 %v562
    %578 = vmatpush1.msra.mxu0 %v561
    %579 = vmatprep.subr.mxu0 %v564
    %580 = vmatpush1.msra.mxu0 %v563
    %581 = vmatprep.subr.mxu0 %v566
    %582 = vmatpush1.msra.mxu0 %v565
    %583 = vmatprep.subr.mxu0 %v568
    %584 = vmatpush1.msra.mxu0 %v567
    %585 = vmatprep.subr.mxu0 %v570
    %586 = vmatpush1.msra.mxu0 %v569
    %587 = vmatprep.subr.mxu0 0.0
    %588 = vmatpush1.msra.mxu0 0.0
    %589 = vmatprep.subr.mxu0 0.0
    %590 = vmatpush1.msra.mxu0 0.0
    %591 = vmatprep.subr.mxu0 0.0
    %592 = vmatpush1.msra.mxu0 0.0
    %593 = vmatprep.subr.mxu0 0.0
    %594 = vmatpush1.msra.mxu0 0.0
    %595 = vmatprep.subr.mxu0 0.0
    %596 = vmatpush1.msra.mxu0 0.0
    %597 = vmatprep.subr.mxu0 0.0
    %598 = vmatpush1.msra.mxu0 0.0
    %599 = vmatprep.subr.mxu0 0.0
    %600 = vmatpush1.msra.mxu0 0.0
    %601 = vmatprep.subr.mxu0 0.0
    %602 = vmatpush1.msra.mxu0 0.0
    %603 = vmatprep.subr.mxu0 0.0
    %604 = vmatpush1.msra.mxu0 0.0
    %605 = vmatprep.subr.mxu0 0.0
    %606 = vmatpush1.msra.mxu0 0.0
    %607 = vmatprep.subr.mxu0 0.0
    %608 = vmatpush1.msra.mxu0 0.0
    %609 = vmatprep.subr.mxu0 0.0
    %610 = vmatpush1.msra.mxu0 0.0
    %611 = vmatprep.subr.mxu0 0.0
    %612 = vmatpush1.msra.mxu0 0.0
    %613 = vmatprep.subr.mxu0 0.0
    %614 = vmatpush1.msra.mxu0 0.0
    %615 = vmatprep.subr.mxu0 0.0
    %616 = vmatpush1.msra.mxu0 0.0
    %617 = vmatprep.subr.mxu0 0.0
    %618 = vmatpush1.msra.mxu0 0.0
    %619 = vmatprep.subr.mxu0 0.0
    %620 = vmatpush1.msra.mxu0 0.0
    %621 = vmatprep.subr.mxu0 0.0
    %622 = vmatpush1.msra.mxu0 0.0
    %623 = vmatprep.subr.mxu0 0.0
    %624 = vmatpush1.msra.mxu0 0.0
    %625 = vmatprep.subr.mxu0 0.0
    %626 = vmatpush1.msra.mxu0 0.0
    %627 = vmatprep.subr.mxu0 0.0
    %628 = vmatpush1.msra.mxu0 0.0
    %629 = vmatprep.subr.mxu0 0.0
    %630 = vmatpush1.msra.mxu0 0.0
    %631 = vmatprep.subr.mxu0 0.0
    %632 = vmatpush1.msra.mxu0 0.0
    %633 = vmatprep.subr.mxu0 0.0
    %634 = vmatpush1.msra.mxu0 0.0
    %635 = vmatprep.mubr.f32.mxu0 0.0
    %636 = vmatmul.mubr.f32.gmra.mrb[0].mxu0 %v246
    %v637 = vpop.f32.mrb[0].mxu0
    %v638 = vadd.f32 %v207, %v637
    %v639 = vpop.f32.mrb[0].mxu0
    %v640 = vadd.f32 %v207, %v639
    %641 = vmatprep.mubr.f32.mxu0 0.0
    %642 = vmatmul.mubr.f32.gmra.mrb[0].mxu0 %v249
    %v643 = vpop.f32.mrb[0].mxu0
    %v644 = vadd.f32 %v212, %v643
    %v645 = vpop.f32.mrb[0].mxu0
    %v646 = vadd.f32 %v212, %v645
    %647 = vmatprep.mubr.f32.mxu0 0.0
    %648 = vmatmul.mubr.f32.gmra.mrb[0].mxu0 %v252
    %v649 = vpop.f32.mrb[0].mxu0
    %v650 = vadd.f32 %v217, %v649
    %v651 = vpop.f32.mrb[0].mxu0
    %v652 = vadd.f32 %v217, %v651
    %653 = vmatprep.mubr.f32.mxu0 0.0
    %654 = vmatmul.mubr.f32.gmra.mrb[0].mxu0 %v255
    %v655 = vpop.f32.mrb[0].mxu0
    %v656 = vadd.f32 %v222, %v655
    %v657 = vpop.f32.mrb[0].mxu0
    %v658 = vadd.f32 %v222, %v657
    %659 = vmatprep.mubr.f32.mxu0 0.0
    %660 = vmatmul.mubr.f32.gmra.mrb[0].mxu0 %v258
    %v661 = vpop.f32.mrb[0].mxu0
    %v662 = vadd.f32 %v227, %v661
    %v663 = vpop.f32.mrb[0].mxu0
    %v664 = vadd.f32 %v227, %v663
    %665 = vmatprep.mubr.f32.mxu0 0.0
    %666 = vmatmul.mubr.f32.gmra.mrb[0].mxu0 %v261
    %v667 = vpop.f32.mrb[0].mxu0
    %v668 = vadd.f32 %v232, %v667
    %v669 = vpop.f32.mrb[0].mxu0
    %v670 = vadd.f32 %v232, %v669
    %671 = vmatprep.mubr.f32.mxu0 0.0
    %672 = vmatmul.mubr.f32.gmra.mrb[0].mxu0 %v264
    %v673 = vpop.f32.mrb[0].mxu0
    %v674 = vadd.f32 %v237, %v673
    %v675 = vpop.f32.mrb[0].mxu0
    %v676 = vadd.f32 %v237, %v675
    %677 = vmatprep.mubr.f32.mxu0 0.0
    %678 = vmatmul.mubr.f32.gmra.mrb[0].mxu0 %v267
    %v679 = vpop.f32.mrb[0].mxu0
    %v680 = vadd.f32 %v242, %v679
    %v681 = vpop.f32.mrb[0].mxu0
    %v682 = vadd.f32 %v242, %v681
    %683 = vdwg.mxu0
    %v684 = vmax.f32 %v638, 0.0
    %v685 = vmax.f32 %v640, 0.0
    %v686 = vmax.f32 %v644, 0.0
    %v687 = vmax.f32 %v646, 0.0
    %v688 = vmax.f32 %v650, 0.0
    %v689 = vmax.f32 %v652, 0.0
    %v690 = vmax.f32 %v656, 0.0
    %v691 = vmax.f32 %v658, 0.0
    %v692 = vmax.f32 %v662, 0.0
    %v693 = vmax.f32 %v664, 0.0
    %v694 = vmax.f32 %v668, 0.0
    %v695 = vmax.f32 %v670, 0.0
    %v696 = vmax.f32 %v674, 0.0
    %v697 = vmax.f32 %v676, 0.0
    %v698 = vmax.f32 %v680, 0.0
    %v699 = vmax.f32 %v682, 0.0
    %700 = vmatprep.subr.mxu0 %v685
    %701 = vmatpush1.msra.mxu0 %v684
    %702 = vmatprep.subr.mxu0 %v687
    %703 = vmatpush1.msra.mxu0 %v686
    %704 = vmatprep.subr.mxu0 %v689
    %705 = vmatpush1.msra.mxu0 %v688
    %706 = vmatprep.subr.mxu0 %v691
    %707 = vmatpush1.msra.mxu0 %v690
    %708 = vmatprep.subr.mxu0 %v693
    %709 = vmatpush1.msra.mxu0 %v692
    %710 = vmatprep.subr.mxu0 %v695
    %711 = vmatpush1.msra.mxu0 %v694
    %712 = vmatprep.subr.mxu0 %v697
    %713 = vmatpush1.msra.mxu0 %v696
    %714 = vmatprep.subr.mxu0 %v699
    %715 = vmatpush1.msra.mxu0 %v698
    %716 = vmatprep.subr.mxu0 0.0
    %717 = vmatpush1.msra.mxu0 0.0
    %718 = vmatprep.subr.mxu0 0.0
    %719 = vmatpush1.msra.mxu0 0.0
    %720 = vmatprep.subr.mxu0 0.0
    %721 = vmatpush1.msra.mxu0 0.0
    %722 = vmatprep.subr.mxu0 0.0
    %723 = vmatpush1.msra.mxu0 0.0
    %724 = vmatprep.subr.mxu0 0.0
    %725 = vmatpush1.msra.mxu0 0.0
    %726 = vmatprep.subr.mxu0 0.0
    %727 = vmatpush1.msra.mxu0 0.0
    %728 = vmatprep.subr.mxu0 0.0
    %729 = vmatpush1.msra.mxu0 0.0
    %730 = vmatprep.subr.mxu0 0.0
    %731 = vmatpush1.msra.mxu0 0.0
    %732 = vmatprep.subr.mxu0 0.0
    %733 = vmatpush1.msra.mxu0 0.0
    %734 = vmatprep.subr.mxu0 0.0
    %735 = vmatpush1.msra.mxu0 0.0
    %736 = vmatprep.subr.mxu0 0.0
    %737 = vmatpush1.msra.mxu0 0.0
    %738 = vmatprep.subr.mxu0 0.0
    %739 = vmatpush1.msra.mxu0 0.0
    %740 = vmatprep.subr.mxu0 0.0
    %741 = vmatpush1.msra.mxu0 0.0
    %742 = vmatprep.subr.mxu0 0.0
    %743 = vmatpush1.msra.mxu0 0.0
    %744 = vmatprep.subr.mxu0 0.0
    %745 = vmatpush1.msra.mxu0 0.0
    %746 = vmatprep.subr.mxu0 0.0
    %747 = vmatpush1.msra.mxu0 0.0
    %748 = vmatprep.subr.mxu0 0.0
    %749 = vmatpush1.msra.mxu0 0.0
    %750 = vmatprep.subr.mxu0 0.0
    %751 = vmatpush1.msra.mxu0 0.0
    %752 = vmatprep.subr.mxu0 0.0
    %753 = vmatpush1.msra.mxu0 0.0
    %754 = vmatprep.subr.mxu0 0.0
    %755 = vmatpush1.msra.mxu0 0.0
    %756 = vmatprep.subr.mxu0 0.0
    %757 = vmatpush1.msra.mxu0 0.0
    %758 = vmatprep.subr.mxu0 0.0
    %759 = vmatpush1.msra.mxu0 0.0
    %760 = vmatprep.subr.mxu0 0.0
    %761 = vmatpush1.msra.mxu0 0.0
    %762 = vmatprep.subr.mxu0 0.0
    %763 = vmatpush1.msra.mxu0 0.0
    %764 = vmatprep.mubr.f32.mxu0 0.0
    %765 = vmatmul.mubr.f32.gmra.mrb[0].mxu0 %v404
    %v766 = vpop.f32.mrb[0].mxu0
    %v767 = vadd.f32 %v401, %v766
    %v768 = vpop.f32.mrb[0].mxu0
    %v769 = vadd.f32 %v401, %v768
    %770 = vdwg.mxu0
    %v773 = vcombine.low %v767, %v769
    %v775 = vunpack.c.l.s4 1966171168
    %v776 = vunpack.c.0.s8 %v775
    %v777 = vlaneseq
    %v778 = vshrl.u32 %v777, 7
    %v779 = vsub.s32 %v776, %v778
    %v780 = vrot.slane %v773, %v779
    %v782 = vunpack.c.l.s4 1966171168
    %v783 = vunpack.c.0.s8 %v782
    %v784 = vlaneseq
    %v785 = vshrl.u32 %v784, 7
    %v786 = vsub.s32 %v783, %v785
    %v787 = vrot.slane %v780, %v786
    %s789 = scalar_lea.vmem [#allocation2], 2
    %790 = vst.msk [vmem:[%s789] sm:$0x3] %vm498, %v787
    %v791 = vcombine.high %v780, %v780
    %v793 = vunpack.c.l.s4 1966171168
    %v794 = vunpack.c.0.s8 %v793
    %v795 = vlaneseq
    %v796 = vshrl.u32 %v795, 7
    %v797 = vsub.s32 %v794, %v796
    %v798 = vrot.slane %v791, %v797
    %s800 = scalar_lea.vmem [#allocation4], 2
    %801 = vst.msk [vmem:[%s800] sm:$0x3] %vm498, %v798
    // Predicated region
    $region30: #{sofanet_forward.1} parent=1 // pred_check
      _
    $region31: #{sofanet_forward.1} parent=1 // pred_check_branch
      %803 = sbr.rel (0) target = $region33
    $region32: #{sofanet_forward.1} parent=1 // pred_region
      %s805 = ssub.s32 64, 16
      %806 = vsyncadd [#allocation3], %s805
      %s808 = sshll.u32 [#allocation2], 4
      %s809 = int_to_ptr.vmem [resolvable:$true] %s808
      %811 = dma.vmem_to_hbm [thread:$0]  %s809, 16, %s7, [#allocation3]
    $region33: #{sofanet_forward.1} parent=1 // pred_fallthru
      _
    // Predicated region
    $region34: #{sofanet_forward.1} parent=1 // pred_check
      _
    $region35: #{sofanet_forward.1} parent=1 // pred_check_branch
      %813 = sbr.rel (0) target = $region37
    $region36: #{sofanet_forward.1} parent=1 // pred_region
      %s815 = ssub.s32 64, 16
      %816 = vsyncadd [#allocation5], %s815
      %s818 = sshll.u32 [#allocation4], 4
      %s819 = int_to_ptr.vmem [resolvable:$true] %s818
      %821 = dma.vmem_to_hbm [thread:$0]  %s819, 16, %s8, [#allocation5]
    $region37: #{sofanet_forward.1} parent=1 // pred_fallthru
      _
    // Predicated region
    $region38: #{sofanet_forward.1} parent=1 // pred_check
      _
    $region39: #{sofanet_forward.1} parent=1 // pred_check_branch
      %823 = sbr.rel (0) target = $region41
    $region40: #{sofanet_forward.1} parent=1 // pred_region
      %824 = dma.done [#allocation3], 64
    $region41: #{sofanet_forward.1} parent=1 // pred_fallthru
      _
    // Predicated region
    $region42: #{sofanet_forward.1} parent=1 // pred_check
      _
    $region43: #{sofanet_forward.1} parent=1 // pred_check_branch
      %826 = sbr.rel (0) target = $region45
    $region44: #{sofanet_forward.1} parent=1 // pred_region
      %827 = dma.done [#allocation5], 64
    $region45: #{sofanet_forward.1} parent=1 // pred_fallthru
      _
    %828 = vsyncpa [#allocation3], 1
    %829 = vsyncpa [#allocation5], 1

</llo_original>
